<compile_context>
chip_gen: v7x
topology: tpu7x:2x2x1
jax: 0.10.0
libtpu: 0.0.40
codegen_flags: <defaults>
</compile_context>

<pallas_src>
import jax
import jax.numpy as jnp
from jax.experimental import pallas as pl
from jax.experimental.pallas import tpu as pltpu


def _round_up(a: int, m: int) -> int:
    return ((a + m - 1) // m) * m


def _se_kernel(x_ref, xse_ref, w1t_ref, b1_ref, w2t_ref, b2_ref, o_ref):
    # x/xse/o : (tile_np, CW) lane-dense tiles (CW is a multiple of 128).
    # w*_ref  : (CW, CW) block-diagonal kron(I_K, W^T), resident across the grid.
    # b*_ref  : (1, CW) K-tiled f32 biases.
    w_dt = w1t_ref.dtype
    xse = xse_ref[...]
    if xse.dtype != w_dt:
        xse = xse.astype(w_dt)          # MXU consumes bf16 natively; no f32 upcast pass

    h = jnp.dot(xse, w1t_ref[...], preferred_element_type=jnp.float32) + b1_ref[...]
    h = jnp.maximum(h, 0.0)             # f32 epilogue (VPU)

    g = jnp.dot(h.astype(w_dt), w2t_ref[...],
                preferred_element_type=jnp.float32) + b2_ref[...]
    gate = jax.nn.sigmoid(g)            # f32 (EUP)

    # Gating multiply in f32 for accuracy on every generation; cast only at the store.
    o_ref[...] = (x_ref[...].astype(jnp.float32) * gate).astype(o_ref.dtype)


def se_layer(x, x_se, w1, b1, w2, b2, *, matmul_dtype=jnp.bfloat16,
             tile_rows=None, in_buffers=2):
    """SELayer forward.

    x, x_se: (B, L, C).  w1, w2: (C, C) Conv1d weights (length-1 kernel dim squeezed).
    b1, b2: (C,).  Returns (B, L, C) in x.dtype.
    """
    B, L, C = x.shape
    N = B * L

    # ---- channel handling: lane-dense packing factor --------------------------------
    if (C <= 128 and 128 % C == 0) or C % 128 == 0:
        Cp = C
    else:
        # Pad channels so they divide (or are a multiple of) 128 -> unmasked stores.
        Cp = pl.next_power_of_2(C) if C < 128 else _round_up(C, 128)
    K = 128 // Cp if Cp <= 128 else 1
    CW = K * Cp

    # ---- row handling: pad only to a multiple of K (< K rows), never to a tile ------
    row_pad = (-N) % K
    chan_pad = Cp - C
    xf = x.reshape(N, C)
    xsf = x_se.reshape(N, C)
    if row_pad or chan_pad:
        cfg = ((0, row_pad), (0, chan_pad))
        xf = jnp.pad(xf, cfg)
        xsf = jnp.pad(xsf, cfg)
    NP = (N + row_pad) // K
    xp = xf.reshape(NP, CW)        # free reshape of a contiguous buffer
    xsp = xsf.reshape(NP, CW)

    # ---- packed (block-diagonal) parameters: row_packed @ kron(I_K, W^T) ------------
    w1f = w1.astype(jnp.float32)
    w2f = w2.astype(jnp.float32)
    b1f = b1.astype(jnp.float32)
    b2f = b2.astype(jnp.float32)
    if chan_pad:
        w1f = jnp.pad(w1f, ((0, chan_pad), (0, chan_pad)))
        w2f = jnp.pad(w2f, ((0, chan_pad), (0, chan_pad)))
        b1f = jnp.pad(b1f, (0, chan_pad))
        b2f = jnp.pad(b2f, (0, chan_pad))
    eyek = jnp.eye(K, dtype=jnp.float32)
    # bf16 operands keep the (mostly-zero) block-diag GEMM far off the critical path on
    # v5e (weak f32 MXU) and v7x (3.2 TB/s roofline); accumulation stays in f32.
    w1t = jnp.kron(eyek, w1f.T).astype(matmul_dtype)
    w2t = jnp.kron(eyek, w2f.T).astype(matmul_dtype)
    b1r = jnp.tile(b1f, K).reshape(1, CW)
    b2r = jnp.tile(b2f, K).reshape(1, CW)

    # ---- tile size: ~2 MiB per input buffer, >= 4 grid steps when there's work ------
    x_isz = jnp.dtype(x.dtype).itemsize
    xse_isz = jnp.dtype(x_se.dtype).itemsize
    align = 16 if min(x_isz, xse_isz) < 4 else 8     # bf16 packs 2 rows / sublane
    if tile_rows is not None:
        tile_np = _round_up(max(int(tile_rows), 1), align)
    else:
        row_bytes = CW * max(x_isz, xse_isz)
        tile_np = _round_up(max((2 * 2**20) // row_bytes, align), align)
        if NP >= 4 * align:
            # keep >= 4 grid steps so both v7x TCs are fed and DMA stays pipelined
            tile_np = min(tile_np, _round_up(pl.cdiv(NP, 4), align))
    if tile_np >= NP:
        tile_np = NP               # single full block (block dim == array dim is legal)
    grid = (pl.cdiv(NP, tile_np),)

    # ---- exact VMEM budget (buffered streams + resident packed weights) -------------
    w_isz = jnp.dtype(matmul_dtype).itemsize
    footprint = (in_buffers * tile_np * CW * (x_isz + xse_isz)   # x / x_se streams
                 + 2 * tile_np * CW * x_isz                      # out stream (2 bufs)
                 + 2 * (2 * CW * CW * w_isz + 2 * CW * 4))       # weights + biases
    vmem_limit = int(min(max(footprint + 4 * 2**20, 16 * 2**20), 48 * 2**20))

    def _io_spec(buffers):
        if buffers == 2:
            return pl.BlockSpec((tile_np, CW), lambda i: (i, 0))
        # Optional: sweep 2 vs 3 input buffers if a trace shows exposed DMA latency.
        return pl.BlockSpec((tile_np, CW), lambda i: (i, 0),
                            pipeline_mode=pl.Buffered(buffers))

    out = pl.pallas_call(
        _se_kernel,
        out_shape=jax.ShapeDtypeStruct((NP, CW), x.dtype),
        grid_spec=pltpu.PrefetchScalarGridSpec(
            num_scalar_prefetch=0,
            grid=grid,
            in_specs=[
                _io_spec(in_buffers),                       # x    (lane-dense)
                _io_spec(in_buffers),                       # x_se (lane-dense)
                pl.BlockSpec((CW, CW), lambda i: (0, 0)),   # W1^T block-diag (resident)
                pl.BlockSpec((1, CW), lambda i: (0, 0)),    # b1 (K-tiled, f32)
                pl.BlockSpec((CW, CW), lambda i: (0, 0)),   # W2^T block-diag (resident)
                pl.BlockSpec((1, CW), lambda i: (0, 0)),    # b2 (K-tiled, f32)
            ],
            out_specs=pl.BlockSpec((tile_np, CW), lambda i: (i, 0)),
        ),
        compiler_params=pltpu.CompilerParams(
            dimension_semantics=("parallel",),   # independent steps -> both TCs on v7x
            vmem_limit_bytes=vmem_limit,
        ),
    )(xp, xsp, w1t, b1r, w2t, b2r)

    out = out.reshape(NP * K, Cp)
    if row_pad or chan_pad:
        out = out[:N, :C]          # only materializes when K-row / channel pad was used
    return out.reshape(B, L, C)


def se_layer_ref(x, x_se, w1, b1, w2, b2):
    # Pure-JAX f32 reference matching the PyTorch module.
    xs = x_se.astype(jnp.float32)
    h = jnp.einsum("blc,oc->blo", xs, w1.astype(jnp.float32)) + b1.astype(jnp.float32)
    h = jnp.maximum(h, 0.0)
    g = jnp.einsum("blc,oc->blo", h, w2.astype(jnp.float32)) + b2.astype(jnp.float32)
    return x.astype(jnp.float32) * jax.nn.sigmoid(g)


if __name__ == "__main__":
    key = jax.random.PRNGKey(0)
    ks = jax.random.split(key, 10)

    # ---- f32, exact f32-matmul path --------------------------------------------------
    B, L, C = 2, 8, 32
    x = jax.random.normal(ks[0], (B, L, C), dtype=jnp.float32)
    x_se = jax.random.normal(ks[1], (B, L, C), dtype=jnp.float32)
    w1 = jax.random.normal(ks[2], (C, C), dtype=jnp.float32) * 0.1
    b1 = jax.random.normal(ks[3], (C,), dtype=jnp.float32) * 0.1
    w2 = jax.random.normal(ks[4], (C, C), dtype=jnp.float32) * 0.1
    b2 = jax.random.normal(ks[5], (C,), dtype=jnp.float32) * 0.1

    ref = se_layer_ref(x, x_se, w1, b1, w2, b2)
    out = jax.block_until_ready(
        se_layer(x, x_se, w1, b1, w2, b2, matmul_dtype=jnp.float32))
    assert out.shape == (B, L, C)
    assert jnp.allclose(out, ref, atol=1e-5, rtol=1e-5), "f32(exact) mismatch"

    # ---- same f32 inputs through the default bf16-operand matmul path ----------------
    out_d = jax.block_until_ready(se_layer(x, x_se, w1, b1, w2, b2))
    assert jnp.allclose(out_d, ref, atol=3e-2, rtol=3e-2), "f32(bf16 matmul) mismatch"

    # ---- bf16 inputs, N not a multiple of K, forced 2-step grid + masked tail block --
    B2, L2 = 3, 37
    x_b = jax.random.normal(ks[6], (B2, L2, C), dtype=jnp.float32).astype(jnp.bfloat16)
    xse_b = jax.random.normal(ks[7], (B2, L2, C), dtype=jnp.float32).astype(jnp.bfloat16)
    out_b = jax.block_until_ready(se_layer(x_b, xse_b, w1, b1, w2, b2, tile_rows=16))
    ref_b = se_layer_ref(x_b, xse_b, w1, b1, w2, b2)
    assert out_b.shape == (B2, L2, C)
    assert jnp.allclose(out_b.astype(jnp.float32), ref_b, atol=3e-2, rtol=3e-2), \
        "bf16 mismatch vs reference"

    # ---- C that does not divide 128 (channel-pad fallback): C=48 packs at Cp=64 ------
    C3, B3, L3 = 48, 2, 5
    x3 = jax.random.normal(ks[8], (B3, L3, C3), dtype=jnp.float32)
    xse3 = jax.random.normal(ks[9], (B3, L3, C3), dtype=jnp.float32)
    w1c = jax.random.normal(ks[2], (C3, C3), dtype=jnp.float32) * 0.1
    b1c = jax.random.normal(ks[3], (C3,), dtype=jnp.float32) * 0.1
    w2c = jax.random.normal(ks[4], (C3, C3), dtype=jnp.float32) * 0.1
    b2c = jax.random.normal(ks[5], (C3,), dtype=jnp.float32) * 0.1
    out3 = jax.block_until_ready(
        se_layer(x3, xse3, w1c, b1c, w2c, b2c, matmul_dtype=jnp.float32))
    ref3 = se_layer_ref(x3, xse3, w1c, b1c, w2c, b2c)
    assert jnp.allclose(out3, ref3, atol=1e-5, rtol=1e-5), "C=48 fallback mismatch"

    print("KERNEL_OK")
</pallas_src>

<mosaic_0001>
module attributes {stable_mosaic.version = 11 : i64} {
  func.func @_se_kernel(%arg0: i32, %arg1: memref<4x128xf32, #tpu.memory_space<vmem>>, %arg2: memref<4x128xf32, #tpu.memory_space<vmem>>, %arg3: memref<128x128xf32, #tpu.memory_space<vmem>>, %arg4: memref<1x128xf32, #tpu.memory_space<vmem>>, %arg5: memref<128x128xf32, #tpu.memory_space<vmem>>, %arg6: memref<1x128xf32, #tpu.memory_space<vmem>>, %arg7: memref<4x128xf32, #tpu.memory_space<vmem>>) attributes {dimension_semantics = [#tpu.dimension_semantics<parallel>], iteration_bounds = array<i64: 1>, scalar_prefetch = 0 : i64, scratch_operands = 0 : i64, tpu.core_type = #tpu.core_type<tc>, window_params = [{transform_indices = @transform_0, window_bounds = array<i64: 4, 128>}, {transform_indices = @transform_1, window_bounds = array<i64: 4, 128>}, {pipeline_mode = #tpu.pipeline_mode<synchronous>, transform_indices = @transform_2, window_bounds = array<i64: 128, 128>}, {pipeline_mode = #tpu.pipeline_mode<synchronous>, transform_indices = @transform_3, window_bounds = array<i64: 1, 128>}, {pipeline_mode = #tpu.pipeline_mode<synchronous>, transform_indices = @transform_4, window_bounds = array<i64: 128, 128>}, {pipeline_mode = #tpu.pipeline_mode<synchronous>, transform_indices = @transform_5, window_bounds = array<i64: 1, 128>}, {transform_indices = @transform_6, window_bounds = array<i64: 4, 128>}]} {
    %c0 = arith.constant 0 : index
    %c0_0 = arith.constant 0 : index
    %0 = vector.load %arg2[%c0, %c0_0] : memref<4x128xf32, #tpu.memory_space<vmem>>, vector<4x128xf32>
    %c0_1 = arith.constant 0 : index
    %c0_2 = arith.constant 0 : index
    %1 = vector.load %arg3[%c0_1, %c0_2] : memref<128x128xf32, #tpu.memory_space<vmem>>, vector<128x128xf32>
    %cst = arith.constant dense<0.000000e+00> : vector<4x128xf32>
    %2 = tpu.matmul %0, %1, %cst {dimension_numbers = #tpu.dot_dimension_numbers<[1], [0], [0], [1], [0, 0, 1, 1], [], []>} : vector<4x128xf32>, vector<128x128xf32>, vector<4x128xf32> -> vector<4x128xf32>
    %c0_3 = arith.constant 0 : index
    %c0_4 = arith.constant 0 : index
    %3 = vector.load %arg4[%c0_3, %c0_4] : memref<1x128xf32, #tpu.memory_space<vmem>>, vector<1x128xf32>
    %4 = vector.broadcast %3 : vector<1x128xf32> to vector<4x128xf32>
    %5 = arith.addf %2, %4 : vector<4x128xf32>
    %cst_5 = arith.constant 0.000000e+00 : f32
    %6 = vector.broadcast %cst_5 : f32 to vector<4x128xf32>
    %7 = arith.maximumf %5, %6 : vector<4x128xf32>
    %c0_6 = arith.constant 0 : index
    %c0_7 = arith.constant 0 : index
    %8 = vector.load %arg5[%c0_6, %c0_7] : memref<128x128xf32, #tpu.memory_space<vmem>>, vector<128x128xf32>
    %cst_8 = arith.constant dense<0.000000e+00> : vector<4x128xf32>
    %9 = tpu.matmul %7, %8, %cst_8 {dimension_numbers = #tpu.dot_dimension_numbers<[1], [0], [0], [1], [0, 0, 1, 1], [], []>} : vector<4x128xf32>, vector<128x128xf32>, vector<4x128xf32> -> vector<4x128xf32>
    %c0_9 = arith.constant 0 : index
    %c0_10 = arith.constant 0 : index
    %10 = vector.load %arg6[%c0_9, %c0_10] : memref<1x128xf32, #tpu.memory_space<vmem>>, vector<1x128xf32>
    %11 = vector.broadcast %10 : vector<1x128xf32> to vector<4x128xf32>
    %12 = arith.addf %9, %11 : vector<4x128xf32>
    %13 = arith.negf %12 : vector<4x128xf32>
    %14 = math.exp %13 : vector<4x128xf32>
    %cst_11 = arith.constant 1.000000e+00 : f32
    %15 = vector.broadcast %cst_11 : f32 to vector<4x128xf32>
    %16 = arith.addf %15, %14 : vector<4x128xf32>
    %17 = arith.divf %15, %16 : vector<4x128xf32>
    %c0_12 = arith.constant 0 : index
    %c0_13 = arith.constant 0 : index
    %18 = vector.load %arg1[%c0_12, %c0_13] : memref<4x128xf32, #tpu.memory_space<vmem>>, vector<4x128xf32>
    %19 = arith.mulf %18, %17 : vector<4x128xf32>
    %c0_14 = arith.constant 0 : index
    %c0_15 = arith.constant 0 : index
    %20 = vector.load %arg7[%c0_14, %c0_15] : memref<4x128xf32, #tpu.memory_space<vmem>>, vector<4x128xf32>
    tpu.vector_store %arg7[%c0_14, %c0_15], %19 {strides = array<i32>} : memref<4x128xf32, #tpu.memory_space<vmem>>, vector<4x128xf32>,
    return
  }
  func.func @transform_0(%arg0: i32) -> (i32, i32) {
    %c0_i32 = arith.constant 0 : i32
    %c0_i32_0 = arith.constant 0 : i32
    return %arg0, %c0_i32 : i32, i32
  }
  func.func @transform_1(%arg0: i32) -> (i32, i32) {
    %c0_i32 = arith.constant 0 : i32
    %c0_i32_0 = arith.constant 0 : i32
    return %arg0, %c0_i32 : i32, i32
  }
  func.func @transform_2(%arg0: i32) -> (i32, i32) {
    %c0_i32 = arith.constant 0 : i32
    %c0_i32_0 = arith.constant 0 : i32
    %c0_i32_1 = arith.constant 0 : i32
    return %c0_i32, %c0_i32_0 : i32, i32
  }
  func.func @transform_3(%arg0: i32) -> (i32, i32) {
    %c0_i32 = arith.constant 0 : i32
    %c0_i32_0 = arith.constant 0 : i32
    %c0_i32_1 = arith.constant 0 : i32
    return %c0_i32, %c0_i32_0 : i32, i32
  }
  func.func @transform_4(%arg0: i32) -> (i32, i32) {
    %c0_i32 = arith.constant 0 : i32
    %c0_i32_0 = arith.constant 0 : i32
    %c0_i32_1 = arith.constant 0 : i32
    return %c0_i32, %c0_i32_0 : i32, i32
  }
  func.func @transform_5(%arg0: i32) -> (i32, i32) {
    %c0_i32 = arith.constant 0 : i32
    %c0_i32_0 = arith.constant 0 : i32
    %c0_i32_1 = arith.constant 0 : i32
    return %c0_i32, %c0_i32_0 : i32, i32
  }
  func.func @transform_6(%arg0: i32) -> (i32, i32) {
    %c0_i32 = arith.constant 0 : i32
    %c0_i32_0 = arith.constant 0 : i32
    return %arg0, %c0_i32 : i32, i32
  }
}

</mosaic_0001>

<llo_original>
// kernel: tpu_custom_call.1
$region0: #{tpu_custom_call.1}
  #allocation0 [shape = 'u32[]', space=smem, size = 0x4, offset = 0x4, fixed_abs, tag = 'smem constant byte address 0x4 - core index']
  #allocation1 [shape = 'u32[144,128]{1,0:T(1,128)}', space=vmem, size = 0x12000, scoped, tag = 'internal scratch']
  %s0 = inlined_call_operand.hbm [shape: f32[4,128], index: 0, kind: input, shape index: {}]
  %s1 = inlined_call_operand.hbm [shape: f32[4,128], index: 1, kind: input, shape index: {}]
  %s2 = inlined_call_operand.hbm [shape: f32[128,128], index: 2, kind: input, shape index: {}]
  %s3 = inlined_call_operand.vmem [shape: f32[1,128], index: 3, kind: input, shape index: {}]
  %s4 = inlined_call_operand.hbm [shape: f32[128,128], index: 4, kind: input, shape index: {}]
  %s5 = inlined_call_operand.vmem [shape: f32[1,128], index: 5, kind: input, shape index: {}]
  %s6 = inlined_call_operand.hbm [shape: f32[4,128], index: 6, kind: output, shape index: {}]
  %s7 = sld [smem:[#allocation0]]
  $region50: #{tpu_custom_call.1} parent=0
    _
  %s9 = ssub.s32 1, %s7
  %s10 = scalar_select 0, %s9, %s7
  $region1: #{tpu_custom_call.1} parent=0
    #allocation2 [shape = 'u8[2048]{0}', space=vmem, size = 0x800, scoped, tag = 'input window, operand 0, single buffered']
    #allocation3 [shape = 's32[1]{0}', space=sflag, size = 0x4, scoped, tag = 'scoped memory for tpu_custom_call.1']
    #allocation4 [shape = 's32[1]{0}', space=sflag, size = 0x4, scoped, tag = 'scoped memory for tpu_custom_call.1']
    #allocation5 [shape = 'u8[2048]{0}', space=vmem, size = 0x800, scoped, tag = 'input window, operand 1, single buffered']
    #allocation6 [shape = 's32[1]{0}', space=sflag, size = 0x4, scoped, tag = 'scoped memory for tpu_custom_call.1']
    #allocation7 [shape = 'u8[65536]{0}', space=vmem, size = 0x10000, scoped, tag = 'input window, operand 2, single buffered']
    #allocation8 [shape = 'u8[65536]{0}', space=vmem, size = 0x10000, scoped, tag = 'input window, operand 4, single buffered']
    #allocation9 [shape = 's32[1]{0}', space=sflag, size = 0x4, scoped, tag = 'scoped memory for tpu_custom_call.1']
    #allocation10 [shape = 'u8[2048]{0}', space=vmem, size = 0x800, scoped, tag = 'output window, operand 0, single buffered']
    %11 = vsyncpa [#allocation3], 0
    %12 = vsyncpa [#allocation6], 0
    %13 = vsyncpa [#allocation9], 0
    %14 = vsyncpa [#allocation4], 0
    // Predicated region
    $region2: #{tpu_custom_call.1} parent=1 // pred_check
      _
    $region3: #{tpu_custom_call.1} parent=1 // pred_check_branch
      %16 = sbr.rel (0) target = $region5
    $region4: #{tpu_custom_call.1} parent=1 // pred_region
      %s18 = ssub.s32 64, 64
      %19 = vsyncadd [#allocation3], %s18
      %s21 = sshll.u32 [#allocation2], 4
      %s22 = int_to_ptr.vmem [resolvable:$true] %s21
      %24 = dma.hbm_to_vmem [thread:$0]  %s0, 64, %s22, [#allocation3]
    $region5: #{tpu_custom_call.1} parent=1 // pred_fallthru
      _
    // Predicated region
    $region6: #{tpu_custom_call.1} parent=1 // pred_check
      _
    $region7: #{tpu_custom_call.1} parent=1 // pred_check_branch
      %26 = sbr.rel (0) target = $region9
    $region8: #{tpu_custom_call.1} parent=1 // pred_region
      %s28 = ssub.s32 64, 64
      %29 = vsyncadd [#allocation6], %s28
      %s31 = sshll.u32 [#allocation5], 4
      %s32 = int_to_ptr.vmem [resolvable:$true] %s31
      %34 = dma.hbm_to_vmem [thread:$0]  %s1, 64, %s32, [#allocation6]
    $region9: #{tpu_custom_call.1} parent=1 // pred_fallthru
      _
    // Predicated region
    $region10: #{tpu_custom_call.1} parent=1 // pred_check
      _
    $region11: #{tpu_custom_call.1} parent=1 // pred_check_branch
      %36 = sbr.rel (0) target = $region13
    $region12: #{tpu_custom_call.1} parent=1 // pred_region
      %s38 = ssub.s32 2048, 2048
      %39 = vsyncadd [#allocation6], %s38
      %s40 = sshll.u32 [#allocation7], 4
      %s41 = int_to_ptr.vmem [resolvable:$true] %s40
      %46 = dma.hbm_to_vmem [thread:$0]  %s2, 2048, %s41, [#allocation6], 128, 128, 8
    $region13: #{tpu_custom_call.1} parent=1 // pred_fallthru
      _
    // Predicated region
    $region14: #{tpu_custom_call.1} parent=1 // pred_check
      _
    $region15: #{tpu_custom_call.1} parent=1 // pred_check_branch
      %48 = sbr.rel (0) target = $region17
    $region16: #{tpu_custom_call.1} parent=1 // pred_region
      _
    $region17: #{tpu_custom_call.1} parent=1 // pred_fallthru
      _
    // Predicated region
    $region18: #{tpu_custom_call.1} parent=1 // pred_check
      _
    $region19: #{tpu_custom_call.1} parent=1 // pred_check_branch
      %50 = sbr.rel (0) target = $region21
    $region20: #{tpu_custom_call.1} parent=1 // pred_region
      %s52 = ssub.s32 2048, 2048
      %53 = vsyncadd [#allocation9], %s52
      %s54 = sshll.u32 [#allocation8], 4
      %s55 = int_to_ptr.vmem [resolvable:$true] %s54
      %60 = dma.hbm_to_vmem [thread:$0]  %s4, 2048, %s55, [#allocation9], 128, 128, 8
    $region21: #{tpu_custom_call.1} parent=1 // pred_fallthru
      _
    // Predicated region
    $region22: #{tpu_custom_call.1} parent=1 // pred_check
      _
    $region23: #{tpu_custom_call.1} parent=1 // pred_check_branch
      %62 = sbr.rel (0) target = $region25
    $region24: #{tpu_custom_call.1} parent=1 // pred_region
      _
    $region25: #{tpu_custom_call.1} parent=1 // pred_fallthru
      _
    // Predicated region
    $region26: #{tpu_custom_call.1} parent=1 // pred_check
      _
    $region27: #{tpu_custom_call.1} parent=1 // pred_check_branch
      %64 = sbr.rel (0) target = $region29
    $region28: #{tpu_custom_call.1} parent=1 // pred_region
      %65 = dma.done [#allocation3], 64
    $region29: #{tpu_custom_call.1} parent=1 // pred_fallthru
      _
    // Predicated region
    $region30: #{tpu_custom_call.1} parent=1 // pred_check
      _
    $region31: #{tpu_custom_call.1} parent=1 // pred_check_branch
      %67 = sbr.rel (0) target = $region33
    $region32: #{tpu_custom_call.1} parent=1 // pred_region
      %68 = dma.done [#allocation6], 64
    $region33: #{tpu_custom_call.1} parent=1 // pred_fallthru
      _
    // Predicated region
    $region34: #{tpu_custom_call.1} parent=1 // pred_check
      _
    $region35: #{tpu_custom_call.1} parent=1 // pred_check_branch
      %70 = sbr.rel (0) target = $region37
    $region36: #{tpu_custom_call.1} parent=1 // pred_region
      %71 = dma.done [#allocation6], 2048
    $region37: #{tpu_custom_call.1} parent=1 // pred_fallthru
      _
    // Predicated region
    $region38: #{tpu_custom_call.1} parent=1 // pred_check
      _
    $region39: #{tpu_custom_call.1} parent=1 // pred_check_branch
      %73 = sbr.rel (0) target = $region41
    $region40: #{tpu_custom_call.1} parent=1 // pred_region
      %74 = dma.done [#allocation9], 2048
    $region41: #{tpu_custom_call.1} parent=1 // pred_fallthru
      _
    %v75 = vld [vmem:[#allocation5] sm:$0xf]
    %v76 = vld [vmem:[#allocation7] sm:$0xff]
    %v77 = vld [vmem:[#allocation7 + $0x8] sm:$0xff]
    %v78 = vld [vmem:[#allocation7 + $0x10] sm:$0xff]
    %v79 = vld [vmem:[#allocation7 + $0x18] sm:$0xff]
    %v80 = vld [vmem:[#allocation7 + $0x20] sm:$0xff]
    %v81 = vld [vmem:[#allocation7 + $0x28] sm:$0xff]
    %v82 = vld [vmem:[#allocation7 + $0x30] sm:$0xff]
    %v83 = vld [vmem:[#allocation7 + $0x38] sm:$0xff]
    %v84 = vld [vmem:[#allocation7 + $0x40] sm:$0xff]
    %v85 = vld [vmem:[#allocation7 + $0x48] sm:$0xff]
    %v86 = vld [vmem:[#allocation7 + $0x50] sm:$0xff]
    %v87 = vld [vmem:[#allocation7 + $0x58] sm:$0xff]
    %v88 = vld [vmem:[#allocation7 + $0x60] sm:$0xff]
    %v89 = vld [vmem:[#allocation7 + $0x68] sm:$0xff]
    %v90 = vld [vmem:[#allocation7 + $0x70] sm:$0xff]
    %v91 = vld [vmem:[#allocation7 + $0x78] sm:$0xff]
    %v92 = vld [vmem:[%s3] sm:$0x1]
    %v94 = vlaneseq
    %v95 = vshrl.u32 %v94, 7
    %v96 = vsub.s32 0, %v95
    %v97 = vrot.slane %v92, %v96
    %99 = vmatprep.subr.mxu0 0.0
    %100 = vmatpush1.msra.mxu0 %v76
    %101 = vmatprep.subr.mxu0 0.0
    %102 = vmatpush1.msra.mxu0 %v77
    %103 = vmatprep.subr.mxu0 0.0
    %104 = vmatpush1.msra.mxu0 %v78
    %105 = vmatprep.subr.mxu0 0.0
    %106 = vmatpush1.msra.mxu0 %v79
    %107 = vmatprep.subr.mxu0 0.0
    %108 = vmatpush1.msra.mxu0 %v80
    %109 = vmatprep.subr.mxu0 0.0
    %110 = vmatpush1.msra.mxu0 %v81
    %111 = vmatprep.subr.mxu0 0.0
    %112 = vmatpush1.msra.mxu0 %v82
    %113 = vmatprep.subr.mxu0 0.0
    %114 = vmatpush1.msra.mxu0 %v83
    %115 = vmatprep.subr.mxu0 0.0
    %116 = vmatpush1.msra.mxu0 %v84
    %117 = vmatprep.subr.mxu0 0.0
    %118 = vmatpush1.msra.mxu0 %v85
    %119 = vmatprep.subr.mxu0 0.0
    %120 = vmatpush1.msra.mxu0 %v86
    %121 = vmatprep.subr.mxu0 0.0
    %122 = vmatpush1.msra.mxu0 %v87
    %123 = vmatprep.subr.mxu0 0.0
    %124 = vmatpush1.msra.mxu0 %v88
    %125 = vmatprep.subr.mxu0 0.0
    %126 = vmatpush1.msra.mxu0 %v89
    %127 = vmatprep.subr.mxu0 0.0
    %128 = vmatpush1.msra.mxu0 %v90
    %129 = vmatprep.subr.mxu0 0.0
    %130 = vmatpush1.msra.mxu0 %v91
    %131 = vmatprep.subr.mxu0 0.0
    %132 = vmatpush1.msra.mxu0 0.0
    %133 = vmatprep.subr.mxu0 0.0
    %134 = vmatpush1.msra.mxu0 0.0
    %135 = vmatprep.subr.mxu0 0.0
    %136 = vmatpush1.msra.mxu0 0.0
    %137 = vmatprep.subr.mxu0 0.0
    %138 = vmatpush1.msra.mxu0 0.0
    %139 = vmatprep.subr.mxu0 0.0
    %140 = vmatpush1.msra.mxu0 0.0
    %141 = vmatprep.subr.mxu0 0.0
    %142 = vmatpush1.msra.mxu0 0.0
    %143 = vmatprep.subr.mxu0 0.0
    %144 = vmatpush1.msra.mxu0 0.0
    %145 = vmatprep.subr.mxu0 0.0
    %146 = vmatpush1.msra.mxu0 0.0
    %147 = vmatprep.subr.mxu0 0.0
    %148 = vmatpush1.msra.mxu0 0.0
    %149 = vmatprep.subr.mxu0 0.0
    %150 = vmatpush1.msra.mxu0 0.0
    %151 = vmatprep.subr.mxu0 0.0
    %152 = vmatpush1.msra.mxu0 0.0
    %153 = vmatprep.subr.mxu0 0.0
    %154 = vmatpush1.msra.mxu0 0.0
    %155 = vmatprep.subr.mxu0 0.0
    %156 = vmatpush1.msra.mxu0 0.0
    %157 = vmatprep.subr.mxu0 0.0
    %158 = vmatpush1.msra.mxu0 0.0
    %159 = vmatprep.subr.mxu0 0.0
    %160 = vmatpush1.msra.mxu0 0.0
    %161 = vmatprep.subr.mxu0 0.0
    %162 = vmatpush1.msra.mxu0 0.0
    %163 = vmatprep.mubr.f32.mxu0 0.0
    %164 = vmatmul.mubr.f32.gmra.mrb[0].mxu0 %v75
    %v165 = vpop.f32.mrb[0].mxu0
    %v166 = vadd.f32 %v97, %v165
    %v167 = vpop.f32.mrb[0].mxu0
    %168 = vdwg.mxu0
    %v169 = vmax.f32 %v166, 0.0
    %v170 = vld [vmem:[#allocation8] sm:$0xff]
    %v171 = vld [vmem:[#allocation8 + $0x8] sm:$0xff]
    %v172 = vld [vmem:[#allocation8 + $0x10] sm:$0xff]
    %v173 = vld [vmem:[#allocation8 + $0x18] sm:$0xff]
    %v174 = vld [vmem:[#allocation8 + $0x20] sm:$0xff]
    %v175 = vld [vmem:[#allocation8 + $0x28] sm:$0xff]
    %v176 = vld [vmem:[#allocation8 + $0x30] sm:$0xff]
    %v177 = vld [vmem:[#allocation8 + $0x38] sm:$0xff]
    %v178 = vld [vmem:[#allocation8 + $0x40] sm:$0xff]
    %v179 = vld [vmem:[#allocation8 + $0x48] sm:$0xff]
    %v180 = vld [vmem:[#allocation8 + $0x50] sm:$0xff]
    %v181 = vld [vmem:[#allocation8 + $0x58] sm:$0xff]
    %v182 = vld [vmem:[#allocation8 + $0x60] sm:$0xff]
    %v183 = vld [vmem:[#allocation8 + $0x68] sm:$0xff]
    %v184 = vld [vmem:[#allocation8 + $0x70] sm:$0xff]
    %v185 = vld [vmem:[#allocation8 + $0x78] sm:$0xff]
    %v186 = vld [vmem:[%s5] sm:$0x1]
    %v188 = vlaneseq
    %v189 = vshrl.u32 %v188, 7
    %v190 = vsub.s32 0, %v189
    %v191 = vrot.slane %v186, %v190
    %193 = vmatprep.subr.mxu0 0.0
    %194 = vmatpush1.msra.mxu0 %v170
    %195 = vmatprep.subr.mxu0 0.0
    %196 = vmatpush1.msra.mxu0 %v171
    %197 = vmatprep.subr.mxu0 0.0
    %198 = vmatpush1.msra.mxu0 %v172
    %199 = vmatprep.subr.mxu0 0.0
    %200 = vmatpush1.msra.mxu0 %v173
    %201 = vmatprep.subr.mxu0 0.0
    %202 = vmatpush1.msra.mxu0 %v174
    %203 = vmatprep.subr.mxu0 0.0
    %204 = vmatpush1.msra.mxu0 %v175
    %205 = vmatprep.subr.mxu0 0.0
    %206 = vmatpush1.msra.mxu0 %v176
    %207 = vmatprep.subr.mxu0 0.0
    %208 = vmatpush1.msra.mxu0 %v177
    %209 = vmatprep.subr.mxu0 0.0
    %210 = vmatpush1.msra.mxu0 %v178
    %211 = vmatprep.subr.mxu0 0.0
    %212 = vmatpush1.msra.mxu0 %v179
    %213 = vmatprep.subr.mxu0 0.0
    %214 = vmatpush1.msra.mxu0 %v180
    %215 = vmatprep.subr.mxu0 0.0
    %216 = vmatpush1.msra.mxu0 %v181
    %217 = vmatprep.subr.mxu0 0.0
    %218 = vmatpush1.msra.mxu0 %v182
    %219 = vmatprep.subr.mxu0 0.0
    %220 = vmatpush1.msra.mxu0 %v183
    %221 = vmatprep.subr.mxu0 0.0
    %222 = vmatpush1.msra.mxu0 %v184
    %223 = vmatprep.subr.mxu0 0.0
    %224 = vmatpush1.msra.mxu0 %v185
    %225 = vmatprep.subr.mxu0 0.0
    %226 = vmatpush1.msra.mxu0 0.0
    %227 = vmatprep.subr.mxu0 0.0
    %228 = vmatpush1.msra.mxu0 0.0
    %229 = vmatprep.subr.mxu0 0.0
    %230 = vmatpush1.msra.mxu0 0.0
    %231 = vmatprep.subr.mxu0 0.0
    %232 = vmatpush1.msra.mxu0 0.0
    %233 = vmatprep.subr.mxu0 0.0
    %234 = vmatpush1.msra.mxu0 0.0
    %235 = vmatprep.subr.mxu0 0.0
    %236 = vmatpush1.msra.mxu0 0.0
    %237 = vmatprep.subr.mxu0 0.0
    %238 = vmatpush1.msra.mxu0 0.0
    %239 = vmatprep.subr.mxu0 0.0
    %240 = vmatpush1.msra.mxu0 0.0
    %241 = vmatprep.subr.mxu0 0.0
    %242 = vmatpush1.msra.mxu0 0.0
    %243 = vmatprep.subr.mxu0 0.0
    %244 = vmatpush1.msra.mxu0 0.0
    %245 = vmatprep.subr.mxu0 0.0
    %246 = vmatpush1.msra.mxu0 0.0
    %247 = vmatprep.subr.mxu0 0.0
    %248 = vmatpush1.msra.mxu0 0.0
    %249 = vmatprep.subr.mxu0 0.0
    %250 = vmatpush1.msra.mxu0 0.0
    %251 = vmatprep.subr.mxu0 0.0
    %252 = vmatpush1.msra.mxu0 0.0
    %253 = vmatprep.subr.mxu0 0.0
    %254 = vmatpush1.msra.mxu0 0.0
    %255 = vmatprep.subr.mxu0 0.0
    %256 = vmatpush1.msra.mxu0 0.0
    %257 = vmatprep.mubr.f32.mxu0 0.0
    %258 = vmatmul.mubr.f32.gmra.mrb[0].mxu0 %v169
    %v259 = vpop.f32.mrb[0].mxu0
    %v260 = vadd.f32 %v191, %v259
    %v261 = vpop.f32.mrb[0].mxu0
    %262 = vdwg.mxu0
    %v263 = vxor.u32 %v260, 2147483648
    %v264 = vmul.f32 %v263, 1.442695
    %v265 = vpow.pop %v264
    %v266 = vadd.f32 %v265, 1.0
    %v267 = vrcp.pop %v266
    %v268 = vmul.f32 1.0, %v267
    %v269 = vld [vmem:[#allocation2] sm:$0xf]
    %v270 = vmul.f32 %v269, %v268
    %271 = vst [vmem:[#allocation10] sm:$0xf] %v270
    // Predicated region
    $region42: #{tpu_custom_call.1} parent=1 // pred_check
      _
    $region43: #{tpu_custom_call.1} parent=1 // pred_check_branch
      %273 = sbr.rel (0) target = $region45
    $region44: #{tpu_custom_call.1} parent=1 // pred_region
      %s275 = ssub.s32 64, 64
      %276 = vsyncadd [#allocation4], %s275
      %s278 = sshll.u32 [#allocation10], 4
      %s279 = int_to_ptr.vmem [resolvable:$true] %s278
      %281 = dma.vmem_to_hbm [thread:$0]  %s279, 64, %s6, [#allocation4]
    $region45: #{tpu_custom_call.1} parent=1 // pred_fallthru
      _
    // Predicated region
    $region46: #{tpu_custom_call.1} parent=1 // pred_check
      _
    $region47: #{tpu_custom_call.1} parent=1 // pred_check_branch
      %283 = sbr.rel (0) target = $region49
    $region48: #{tpu_custom_call.1} parent=1 // pred_region
      %284 = dma.done [#allocation4], 64
    $region49: #{tpu_custom_call.1} parent=1 // pred_fallthru
      _
    %285 = vsyncpa [#allocation3], 1
    %286 = vsyncpa [#allocation6], 1
    %287 = vsyncpa [#allocation9], 1
    %288 = vsyncpa [#allocation4], 1

</llo_original>
